<compile_context>
chip_gen: v5e
topology: v5e:2x2
jax: 0.10.0
libtpu: 0.0.40
codegen_flags: <defaults>
</compile_context>

<pallas_src>
import jax
import jax.numpy as jnp
from jax.experimental import pallas as pl
from jax.experimental.pallas import tpu as pltpu

H_PAD = 128  # padded hidden width (fc1/fc2 logical 64 -> full 128 lanes)


def qnetwork_kernel(x_ref, w1_ref, b1_ref, w2_ref, b2_ref, wq_ref, bq_ref, out_ref):
    # In-kernel cast to bf16 (replaces a full wrapper-side HBM read+write pass).
    x = x_ref[...].astype(w1_ref.dtype)
    # fc1 + ReLU (bf16 MXU inputs, f32 accumulate / bias / ReLU)
    h1 = jnp.dot(x, w1_ref[...], preferred_element_type=jnp.float32)
    h1 = jnp.maximum(h1 + b1_ref[...], 0.0).astype(w2_ref.dtype)
    # fc2 + ReLU
    h2 = jnp.dot(h1, w2_ref[...], preferred_element_type=jnp.float32)
    h2 = jnp.maximum(h2 + b2_ref[...], 0.0).astype(wq_ref.dtype)
    # Fused value+advantage head: Q = h2 @ (ws*1^T + wa) + (bs + ba)
    q = jnp.dot(h2, wq_ref[...], preferred_element_type=jnp.float32) + bq_ref[...]
    out_ref[...] = q.astype(out_ref.dtype)


def init_params(key, state_size, action_size, fc1_units=64, fc2_units=64):
    """PyTorch-style Linear params: weight (out, in), bias (out,), U(-1/sqrt(in), +)."""
    def linear(k, fan_in, fan_out):
        kw, kb = jax.random.split(k)
        bound = 1.0 / jnp.sqrt(float(fan_in))
        w = jax.random.uniform(kw, (fan_out, fan_in), jnp.float32, -bound, bound)
        b = jax.random.uniform(kb, (fan_out,), jnp.float32, -bound, bound)
        return w, b

    k1, k2, k3, k4 = jax.random.split(key, 4)
    w1, b1 = linear(k1, state_size, fc1_units)
    w2, b2 = linear(k2, fc1_units, fc2_units)
    ws, bs = linear(k3, fc2_units, 1)
    wa, ba = linear(k4, fc2_units, action_size)
    return {"w1": w1, "b1": b1, "w2": w2, "b2": b2,
            "ws": ws, "bs": bs, "wa": wa, "ba": ba}


def prepare_params(p, compute_dtype=jnp.bfloat16):
    """Transpose to (in, out), zero-pad hidden dim, fuse V+A heads, cast to bf16."""
    fc1, state_size = p["w1"].shape
    fc2 = p["w2"].shape[0]
    action_size = p["wa"].shape[0]

    w1 = jnp.zeros((state_size, H_PAD), jnp.float32).at[:, :fc1].set(p["w1"].T)
    b1 = jnp.zeros((1, H_PAD), jnp.float32).at[0, :fc1].set(p["b1"])
    w2 = jnp.zeros((H_PAD, H_PAD), jnp.float32).at[:fc1, :fc2].set(p["w2"].T)
    b2 = jnp.zeros((1, H_PAD), jnp.float32).at[0, :fc2].set(p["b2"])

    # Fused head: Q = h2 @ (ws broadcast over A cols + wa) + (bs + ba).
    # (The original module does Q = V + A with no mean-subtraction, so this is exact.)
    wq_log = p["wa"].T + jnp.broadcast_to(p["ws"].T, (fc2, action_size))
    bq = (p["ba"] + p["bs"]).reshape(1, action_size)
    wq = jnp.zeros((H_PAD, action_size), jnp.float32).at[:fc2, :].set(wq_log)

    return {"w1": w1.astype(compute_dtype), "b1": b1,
            "w2": w2.astype(compute_dtype), "b2": b2,
            "wq": wq.astype(compute_dtype), "bq": bq,
            "action_size": action_size}


def qnetwork_forward(state, prepared, tb_max=2048):
    """state: (B, state_size) f32 -> Q-values (B, action_size) f32."""
    B, S = state.shape
    A = prepared["action_size"]

    # Round batch to a multiple of 16 (bf16 sublane packing). Single grid step for
    # B <= tb_max; larger batches tile at tb_max (>= 2 steps -> both v7x TCs engage).
    b_pad = pl.cdiv(B, 16) * 16
    if b_pad <= tb_max:
        tb = b_pad
    else:
        tb = tb_max
        b_pad = pl.cdiv(b_pad, tb) * tb
    n_tiles = b_pad // tb

    x = state  # f32; cast to bf16 happens inside the kernel
    if b_pad != B:
        x = jnp.pad(x, ((0, b_pad - B), (0, 0)))

    resident = lambda i: (0, 0)   # weights/biases stay in VMEM across grid steps
    out = pl.pallas_call(
        qnetwork_kernel,
        out_shape=jax.ShapeDtypeStruct((b_pad, A), jnp.float32),
        grid=(n_tiles,),
        in_specs=[
            pl.BlockSpec((tb, S), lambda i: (i, 0)),   # state tile
            pl.BlockSpec((S, H_PAD), resident),        # w1
            pl.BlockSpec((1, H_PAD), resident),        # b1
            pl.BlockSpec((H_PAD, H_PAD), resident),    # w2
            pl.BlockSpec((1, H_PAD), resident),        # b2
            pl.BlockSpec((H_PAD, A), resident),        # fused head weight
            pl.BlockSpec((1, A), resident),            # fused head bias
        ],
        out_specs=pl.BlockSpec((tb, A), lambda i: (i, 0)),
        compiler_params=pltpu.CompilerParams(
            dimension_semantics=("parallel",),
            vmem_limit_bytes=32 * 1024 * 1024),
    )(x, prepared["w1"], prepared["b1"], prepared["w2"], prepared["b2"],
      prepared["wq"], prepared["bq"])

    if b_pad != B:
        out = out[:B]
    return out


def reference_forward(state, p):
    """Pure f32 reference matching the PyTorch module exactly."""
    h1 = jnp.maximum(state @ p["w1"].T + p["b1"], 0.0)
    h2 = jnp.maximum(h1 @ p["w2"].T + p["b2"], 0.0)
    x_s = h2 @ p["ws"].T + p["bs"]
    x_a = h2 @ p["wa"].T + p["ba"]
    return x_s + x_a


if __name__ == "__main__":
    state_size, action_size = 8, 4

    key = jax.random.PRNGKey(0)
    k_params, k_state, k_state2 = jax.random.split(key, 3)
    params = init_params(k_params, state_size, action_size, fc1_units=64, fc2_units=64)
    prepared = prepare_params(params)

    # Small batch: single-grid-step path + tail padding (2 -> 16 rows).
    state = jax.random.normal(k_state, (2, state_size), jnp.float32)
    out = jax.block_until_ready(qnetwork_forward(state, prepared))
    ref = reference_forward(state, params)
    assert out.shape == (2, action_size)
    # bf16 MXU inputs with f32 accumulation -> loose tolerance vs pure-f32 reference.
    assert jnp.allclose(out, ref, atol=5e-2, rtol=5e-2)

    # Larger batch with a small tb_max to exercise multi-tile grid + tail padding.
    state_big = jax.random.normal(k_state2, (272, state_size), jnp.float32)
    out_big = jax.block_until_ready(qnetwork_forward(state_big, prepared, tb_max=128))
    ref_big = reference_forward(state_big, params)
    assert out_big.shape == (272, action_size)
    assert jnp.allclose(out_big, ref_big, atol=5e-2, rtol=5e-2)

    print("KERNEL_OK")
</pallas_src>

<mosaic_0001>
module attributes {stable_mosaic.version = 11 : i64} {
  func.func @qnetwork_kernel(%arg0: i32, %arg1: memref<16x8xf32, #tpu.memory_space<vmem>>, %arg2: memref<8x128xbf16, #tpu.memory_space<vmem>>, %arg3: memref<1x128xf32, #tpu.memory_space<vmem>>, %arg4: memref<128x128xbf16, #tpu.memory_space<vmem>>, %arg5: memref<1x128xf32, #tpu.memory_space<vmem>>, %arg6: memref<128x4xbf16, #tpu.memory_space<vmem>>, %arg7: memref<1x4xf32, #tpu.memory_space<vmem>>, %arg8: memref<16x4xf32, #tpu.memory_space<vmem>>) attributes {dimension_semantics = [#tpu.dimension_semantics<parallel>], iteration_bounds = array<i64: 1>, scalar_prefetch = 0 : i64, scratch_operands = 0 : i64, tpu.core_type = #tpu.core_type<tc>, window_params = [{transform_indices = @transform_0, window_bounds = array<i64: 16, 8>}, {pipeline_mode = #tpu.pipeline_mode<synchronous>, transform_indices = @transform_1, window_bounds = array<i64: 8, 128>}, {pipeline_mode = #tpu.pipeline_mode<synchronous>, transform_indices = @transform_2, window_bounds = array<i64: 1, 128>}, {pipeline_mode = #tpu.pipeline_mode<synchronous>, transform_indices = @transform_3, window_bounds = array<i64: 128, 128>}, {pipeline_mode = #tpu.pipeline_mode<synchronous>, transform_indices = @transform_4, window_bounds = array<i64: 1, 128>}, {pipeline_mode = #tpu.pipeline_mode<synchronous>, transform_indices = @transform_5, window_bounds = array<i64: 128, 4>}, {pipeline_mode = #tpu.pipeline_mode<synchronous>, transform_indices = @transform_6, window_bounds = array<i64: 1, 4>}, {transform_indices = @transform_7, window_bounds = array<i64: 16, 4>}]} {
    %c0 = arith.constant 0 : index
    %c0_0 = arith.constant 0 : index
    %0 = vector.load %arg1[%c0, %c0_0] : memref<16x8xf32, #tpu.memory_space<vmem>>, vector<16x8xf32>
    %1 = arith.truncf %0 : vector<16x8xf32> to vector<16x8xbf16>
    %c0_1 = arith.constant 0 : index
    %c0_2 = arith.constant 0 : index
    %2 = vector.load %arg2[%c0_1, %c0_2] : memref<8x128xbf16, #tpu.memory_space<vmem>>, vector<8x128xbf16>
    %cst = arith.constant dense<0.000000e+00> : vector<16x128xf32>
    %3 = tpu.matmul %1, %2, %cst {dimension_numbers = #tpu.dot_dimension_numbers<[1], [0], [0], [1], [0, 0, 1, 1], [], []>} : vector<16x8xbf16>, vector<8x128xbf16>, vector<16x128xf32> -> vector<16x128xf32>
    %c0_3 = arith.constant 0 : index
    %c0_4 = arith.constant 0 : index
    %4 = vector.load %arg3[%c0_3, %c0_4] : memref<1x128xf32, #tpu.memory_space<vmem>>, vector<1x128xf32>
    %5 = vector.broadcast %4 : vector<1x128xf32> to vector<16x128xf32>
    %6 = arith.addf %3, %5 : vector<16x128xf32>
    %cst_5 = arith.constant 0.000000e+00 : f32
    %7 = vector.broadcast %cst_5 : f32 to vector<16x128xf32>
    %8 = arith.maximumf %6, %7 : vector<16x128xf32>
    %9 = arith.truncf %8 : vector<16x128xf32> to vector<16x128xbf16>
    %c0_6 = arith.constant 0 : index
    %c0_7 = arith.constant 0 : index
    %10 = vector.load %arg4[%c0_6, %c0_7] : memref<128x128xbf16, #tpu.memory_space<vmem>>, vector<128x128xbf16>
    %cst_8 = arith.constant dense<0.000000e+00> : vector<16x128xf32>
    %11 = tpu.matmul %9, %10, %cst_8 {dimension_numbers = #tpu.dot_dimension_numbers<[1], [0], [0], [1], [0, 0, 1, 1], [], []>} : vector<16x128xbf16>, vector<128x128xbf16>, vector<16x128xf32> -> vector<16x128xf32>
    %c0_9 = arith.constant 0 : index
    %c0_10 = arith.constant 0 : index
    %12 = vector.load %arg5[%c0_9, %c0_10] : memref<1x128xf32, #tpu.memory_space<vmem>>, vector<1x128xf32>
    %13 = vector.broadcast %12 : vector<1x128xf32> to vector<16x128xf32>
    %14 = arith.addf %11, %13 : vector<16x128xf32>
    %cst_11 = arith.constant 0.000000e+00 : f32
    %15 = vector.broadcast %cst_11 : f32 to vector<16x128xf32>
    %16 = arith.maximumf %14, %15 : vector<16x128xf32>
    %17 = arith.truncf %16 : vector<16x128xf32> to vector<16x128xbf16>
    %c0_12 = arith.constant 0 : index
    %c0_13 = arith.constant 0 : index
    %18 = vector.load %arg6[%c0_12, %c0_13] : memref<128x4xbf16, #tpu.memory_space<vmem>>, vector<128x4xbf16>
    %cst_14 = arith.constant dense<0.000000e+00> : vector<16x4xf32>
    %19 = tpu.matmul %17, %18, %cst_14 {dimension_numbers = #tpu.dot_dimension_numbers<[1], [0], [0], [1], [0, 0, 1, 1], [], []>} : vector<16x128xbf16>, vector<128x4xbf16>, vector<16x4xf32> -> vector<16x4xf32>
    %c0_15 = arith.constant 0 : index
    %c0_16 = arith.constant 0 : index
    %20 = vector.load %arg7[%c0_15, %c0_16] : memref<1x4xf32, #tpu.memory_space<vmem>>, vector<1x4xf32>
    %21 = vector.broadcast %20 : vector<1x4xf32> to vector<16x4xf32>
    %22 = arith.addf %19, %21 : vector<16x4xf32>
    %c0_17 = arith.constant 0 : index
    %c0_18 = arith.constant 0 : index
    %23 = vector.load %arg8[%c0_17, %c0_18] : memref<16x4xf32, #tpu.memory_space<vmem>>, vector<16x4xf32>
    tpu.vector_store %arg8[%c0_17, %c0_18], %22 {strides = array<i32>} : memref<16x4xf32, #tpu.memory_space<vmem>>, vector<16x4xf32>,
    return
  }
  func.func @transform_0(%arg0: i32) -> (i32, i32) {
    %c0_i32 = arith.constant 0 : i32
    %c0_i32_0 = arith.constant 0 : i32
    return %arg0, %c0_i32 : i32, i32
  }
  func.func @transform_1(%arg0: i32) -> (i32, i32) {
    %c0_i32 = arith.constant 0 : i32
    %c0_i32_0 = arith.constant 0 : i32
    %c0_i32_1 = arith.constant 0 : i32
    return %c0_i32, %c0_i32_0 : i32, i32
  }
  func.func @transform_2(%arg0: i32) -> (i32, i32) {
    %c0_i32 = arith.constant 0 : i32
    %c0_i32_0 = arith.constant 0 : i32
    %c0_i32_1 = arith.constant 0 : i32
    return %c0_i32, %c0_i32_0 : i32, i32
  }
  func.func @transform_3(%arg0: i32) -> (i32, i32) {
    %c0_i32 = arith.constant 0 : i32
    %c0_i32_0 = arith.constant 0 : i32
    %c0_i32_1 = arith.constant 0 : i32
    return %c0_i32, %c0_i32_0 : i32, i32
  }
  func.func @transform_4(%arg0: i32) -> (i32, i32) {
    %c0_i32 = arith.constant 0 : i32
    %c0_i32_0 = arith.constant 0 : i32
    %c0_i32_1 = arith.constant 0 : i32
    return %c0_i32, %c0_i32_0 : i32, i32
  }
  func.func @transform_5(%arg0: i32) -> (i32, i32) {
    %c0_i32 = arith.constant 0 : i32
    %c0_i32_0 = arith.constant 0 : i32
    %c0_i32_1 = arith.constant 0 : i32
    return %c0_i32, %c0_i32_0 : i32, i32
  }
  func.func @transform_6(%arg0: i32) -> (i32, i32) {
    %c0_i32 = arith.constant 0 : i32
    %c0_i32_0 = arith.constant 0 : i32
    %c0_i32_1 = arith.constant 0 : i32
    return %c0_i32, %c0_i32_0 : i32, i32
  }
  func.func @transform_7(%arg0: i32) -> (i32, i32) {
    %c0_i32 = arith.constant 0 : i32
    %c0_i32_0 = arith.constant 0 : i32
    return %arg0, %c0_i32 : i32, i32
  }
}

</mosaic_0001>

<llo_original>
// kernel: tpu_custom_call.1
$region0: #{tpu_custom_call.1}
  #allocation0 [shape = 'u32[]', space=smem, size = 0x4, offset = 0x4, fixed_abs, tag = 'smem constant byte address 0x4 - core index']
  #allocation1 [shape = 'u32[72,128]{1,0:T(1,128)}', space=vmem, size = 0x9000, scoped, tag = 'internal scratch']
  %s0 = inlined_call_operand.vmem [shape: f32[16,8], index: 0, kind: input, shape index: {}]
  %s1 = inlined_call_operand.vmem [shape: bf16[8,128], index: 1, kind: input, shape index: {}]
  %s2 = inlined_call_operand.vmem [shape: f32[1,128], index: 2, kind: input, shape index: {}]
  %s3 = inlined_call_operand.vmem [shape: bf16[128,128], index: 3, kind: input, shape index: {}]
  %s4 = inlined_call_operand.vmem [shape: f32[1,128], index: 4, kind: input, shape index: {}]
  %s5 = inlined_call_operand.vmem [shape: bf16[128,4], index: 5, kind: input, shape index: {}]
  %s6 = inlined_call_operand.vmem [shape: f32[1,4], index: 6, kind: input, shape index: {}]
  %s7 = inlined_call_operand.vmem [shape: f32[16,4], index: 7, kind: output, shape index: {}]
  %s8 = sld [smem:[#allocation0]]
  $region38: #{tpu_custom_call.1} parent=0
    _
  %s10 = ssub.s32 1, %s8
  %s11 = scalar_select 0, %s10, %s8
  // Predicated region
  $region2: #{tpu_custom_call.1} parent=0 // pred_check
    _
  $region3: #{tpu_custom_call.1} parent=0 // pred_check_branch
    %13 = sbr.rel (0) target = $region5
  $region4: #{tpu_custom_call.1} parent=0 // pred_region
    _
  $region5: #{tpu_custom_call.1} parent=0 // pred_fallthru
    _
  // Predicated region
  $region6: #{tpu_custom_call.1} parent=0 // pred_check
    _
  $region7: #{tpu_custom_call.1} parent=0 // pred_check_branch
    %15 = sbr.rel (0) target = $region9
  $region8: #{tpu_custom_call.1} parent=0 // pred_region
    _
  $region9: #{tpu_custom_call.1} parent=0 // pred_fallthru
    _
  // Predicated region
  $region10: #{tpu_custom_call.1} parent=0 // pred_check
    _
  $region11: #{tpu_custom_call.1} parent=0 // pred_check_branch
    %17 = sbr.rel (0) target = $region13
  $region12: #{tpu_custom_call.1} parent=0 // pred_region
    _
  $region13: #{tpu_custom_call.1} parent=0 // pred_fallthru
    _
  // Predicated region
  $region14: #{tpu_custom_call.1} parent=0 // pred_check
    _
  $region15: #{tpu_custom_call.1} parent=0 // pred_check_branch
    %19 = sbr.rel (0) target = $region17
  $region16: #{tpu_custom_call.1} parent=0 // pred_region
    _
  $region17: #{tpu_custom_call.1} parent=0 // pred_fallthru
    _
  // Predicated region
  $region18: #{tpu_custom_call.1} parent=0 // pred_check
    _
  $region19: #{tpu_custom_call.1} parent=0 // pred_check_branch
    %21 = sbr.rel (0) target = $region21
  $region20: #{tpu_custom_call.1} parent=0 // pred_region
    _
  $region21: #{tpu_custom_call.1} parent=0 // pred_fallthru
    _
  // Predicated region
  $region22: #{tpu_custom_call.1} parent=0 // pred_check
    _
  $region23: #{tpu_custom_call.1} parent=0 // pred_check_branch
    %23 = sbr.rel (0) target = $region25
  $region24: #{tpu_custom_call.1} parent=0 // pred_region
    _
  $region25: #{tpu_custom_call.1} parent=0 // pred_fallthru
    _
  // Predicated region
  $region26: #{tpu_custom_call.1} parent=0 // pred_check
    _
  $region27: #{tpu_custom_call.1} parent=0 // pred_check_branch
    %25 = sbr.rel (0) target = $region29
  $region28: #{tpu_custom_call.1} parent=0 // pred_region
    _
  $region29: #{tpu_custom_call.1} parent=0 // pred_fallthru
    _
  %v27 = vld [vmem:[%s0] sm:$0xff]
  %v28 = vld [vmem:[%s0 + $0x8] sm:$0xff]
  %v29 = vpack.c.bf16 %v28, %v27
  %v30 = vld [vmem:[%s1] sm:$0xf]
  %v31 = vld [vmem:[%s2] sm:$0x1]
  %v33 = vperm.slane %v31, 0
  %vm35 = vcmask 64512
  %v37 = vsel %vm35, %v29, 0
  %vm39 = vcmask 1043456
  %v41 = vsel %vm39, %v30, 0
  %43 = vmatpush.bf16.msra.mxu0 0
  %44 = vmatpush.bf16.msra.mxu0 0
  %45 = vmatpush.bf16.msra.mxu0 0
  %46 = vmatpush.bf16.msra.mxu0 0
  %47 = vmatpush.bf16.msra.mxu0 0
  %48 = vmatpush.bf16.msra.mxu0 0
  %49 = vmatpush.bf16.msra.mxu0 0
  %50 = vmatpush.bf16.msra.mxu0 %v41
  %51 = vmatmul.bf16.gmra.mxu0 %v37
  %v52 = vpop.f32.mrf.mxu0
  %v53 = vadd.f32 %v33, %v52
  %v54 = vpop.f32.mrf.mxu0
  %v55 = vadd.f32 %v33, %v54
  %56 = vdwg.mxu0
  %v57 = vmax.f32 %v53, 0.0
  %v58 = vmax.f32 %v55, 0.0
  %v59 = vpack.c.bf16 %v58, %v57
  %v60 = vld [vmem:[%s3] sm:$0xf]
  %v61 = vld [vmem:[%s3 + $0x4] sm:$0xf]
  %v62 = vld [vmem:[%s3 + $0x8] sm:$0xf]
  %v63 = vld [vmem:[%s3 + $0xc] sm:$0xf]
  %v64 = vld [vmem:[%s3 + $0x10] sm:$0xf]
  %v65 = vld [vmem:[%s3 + $0x14] sm:$0xf]
  %v66 = vld [vmem:[%s3 + $0x18] sm:$0xf]
  %v67 = vld [vmem:[%s3 + $0x1c] sm:$0xf]
  %v68 = vld [vmem:[%s3 + $0x20] sm:$0xf]
  %v69 = vld [vmem:[%s3 + $0x24] sm:$0xf]
  %v70 = vld [vmem:[%s3 + $0x28] sm:$0xf]
  %v71 = vld [vmem:[%s3 + $0x2c] sm:$0xf]
  %v72 = vld [vmem:[%s3 + $0x30] sm:$0xf]
  %v73 = vld [vmem:[%s3 + $0x34] sm:$0xf]
  %v74 = vld [vmem:[%s3 + $0x38] sm:$0xf]
  %v75 = vld [vmem:[%s3 + $0x3c] sm:$0xf]
  %v76 = vld [vmem:[%s4] sm:$0x1]
  %v78 = vperm.slane %v76, 0
  %v96 = vunpack.c.l.b16 %v60
  %v97 = vunpack.c.l.b16 %v61
  %v98 = vunpack.c.l.b16 %v62
  %v99 = vunpack.c.l.b16 %v63
  %v100 = vunpack.c.l.b16 %v64
  %v101 = vunpack.c.l.b16 %v65
  %v102 = vunpack.c.l.b16 %v66
  %v103 = vunpack.c.l.b16 %v67
  %v104 = vunpack.c.l.b16 %v68
  %v105 = vunpack.c.l.b16 %v69
  %v106 = vunpack.c.l.b16 %v70
  %v107 = vunpack.c.l.b16 %v71
  %v108 = vunpack.c.l.b16 %v72
  %v109 = vunpack.c.l.b16 %v73
  %v110 = vunpack.c.l.b16 %v74
  %v111 = vunpack.c.l.b16 %v75
  %v112 = vpack.c.b16 %v97, %v96
  %v113 = vpack.c.b16 %v99, %v98
  %v114 = vpack.c.b16 %v101, %v100
  %v115 = vpack.c.b16 %v103, %v102
  %v116 = vpack.c.b16 %v105, %v104
  %v117 = vpack.c.b16 %v107, %v106
  %v118 = vpack.c.b16 %v109, %v108
  %v119 = vpack.c.b16 %v111, %v110
  %128 = vmatpush.bf16.msra.mxu0 %v119
  %129 = vmatpush.bf16.msra.mxu0 %v118
  %130 = vmatpush.bf16.msra.mxu0 %v117
  %131 = vmatpush.bf16.msra.mxu0 %v116
  %132 = vmatpush.bf16.msra.mxu0 %v115
  %133 = vmatpush.bf16.msra.mxu0 %v114
  %134 = vmatpush.bf16.msra.mxu0 %v113
  %135 = vmatpush.bf16.msra.mxu0 %v112
  %136 = vmatmul.bf16.gmra.mxu0 %v59
  %v137 = vpop.f32.mrf.mxu0
  %v138 = vadd.f32 %v78, %v137
  %v139 = vpop.f32.mrf.mxu0
  %v140 = vadd.f32 %v78, %v139
  %141 = vdwg.mxu0
  %v142 = vmax.f32 %v138, 0.0
  %v143 = vmax.f32 %v140, 0.0
  %v144 = vpack.c.bf16 %v143, %v142
  %v145 = vld [vmem:[%s5] sm:$0xf]
  %v146 = vld [vmem:[%s5 + $0x4] sm:$0xf]
  %v147 = vld [vmem:[%s5 + $0x8] sm:$0xf]
  %v148 = vld [vmem:[%s5 + $0xc] sm:$0xf]
  %v149 = vld [vmem:[%s5 + $0x10] sm:$0xf]
  %v150 = vld [vmem:[%s5 + $0x14] sm:$0xf]
  %v151 = vld [vmem:[%s5 + $0x18] sm:$0xf]
  %v152 = vld [vmem:[%s5 + $0x1c] sm:$0xf]
  %v153 = vld [vmem:[%s5 + $0x20] sm:$0xf]
  %v154 = vld [vmem:[%s5 + $0x24] sm:$0xf]
  %v155 = vld [vmem:[%s5 + $0x28] sm:$0xf]
  %v156 = vld [vmem:[%s5 + $0x2c] sm:$0xf]
  %v157 = vld [vmem:[%s5 + $0x30] sm:$0xf]
  %v158 = vld [vmem:[%s5 + $0x34] sm:$0xf]
  %v159 = vld [vmem:[%s5 + $0x38] sm:$0xf]
  %v160 = vld [vmem:[%s5 + $0x3c] sm:$0xf]
  %v161 = vld [vmem:[%s6] sm:$0x1]
  %v163 = vperm.slane %v161, 0
  %v181 = vunpack.c.l.b16 %v145
  %v182 = vunpack.c.l.b16 %v146
  %v183 = vunpack.c.l.b16 %v147
  %v184 = vunpack.c.l.b16 %v148
  %v185 = vunpack.c.l.b16 %v149
  %v186 = vunpack.c.l.b16 %v150
  %v187 = vunpack.c.l.b16 %v151
  %v188 = vunpack.c.l.b16 %v152
  %v189 = vunpack.c.l.b16 %v153
  %v190 = vunpack.c.l.b16 %v154
  %v191 = vunpack.c.l.b16 %v155
  %v192 = vunpack.c.l.b16 %v156
  %v193 = vunpack.c.l.b16 %v157
  %v194 = vunpack.c.l.b16 %v158
  %v195 = vunpack.c.l.b16 %v159
  %v196 = vunpack.c.l.b16 %v160
  %v197 = vpack.c.b16 %v182, %v181
  %v198 = vpack.c.b16 %v184, %v183
  %v199 = vpack.c.b16 %v186, %v185
  %v200 = vpack.c.b16 %v188, %v187
  %v201 = vpack.c.b16 %v190, %v189
  %v202 = vpack.c.b16 %v192, %v191
  %v203 = vpack.c.b16 %v194, %v193
  %v204 = vpack.c.b16 %v196, %v195
  %213 = vmatpush.bf16.msra.mxu0 %v204
  %214 = vmatpush.bf16.msra.mxu0 %v203
  %215 = vmatpush.bf16.msra.mxu0 %v202
  %216 = vmatpush.bf16.msra.mxu0 %v201
  %217 = vmatpush.bf16.msra.mxu0 %v200
  %218 = vmatpush.bf16.msra.mxu0 %v199
  %219 = vmatpush.bf16.msra.mxu0 %v198
  %220 = vmatpush.bf16.msra.mxu0 %v197
  %221 = vmatmul.bf16.gmra.mxu0 %v144
  %v222 = vpop.f32.mrf.mxu0
  %v223 = vadd.f32 %v163, %v222
  %v224 = vpop.f32.mrf.mxu0
  %v225 = vadd.f32 %v163, %v224
  %226 = vdwg.mxu0
  %vm227 = vcmask 31744
  %228 = vst.msk [vmem:[%s7] sm:$0xff] %vm227, %v223
  %229 = vst.msk [vmem:[%s7 + $0x8] sm:$0xff] %vm227, %v225
  // Predicated region
  $region30: #{tpu_custom_call.1} parent=0 // pred_check
    _
  $region31: #{tpu_custom_call.1} parent=0 // pred_check_branch
    %231 = sbr.rel (0) target = $region33
  $region32: #{tpu_custom_call.1} parent=0 // pred_region
    _
  $region33: #{tpu_custom_call.1} parent=0 // pred_fallthru
    _
  // Predicated region
  $region34: #{tpu_custom_call.1} parent=0 // pred_check
    _
  $region35: #{tpu_custom_call.1} parent=0 // pred_check_branch
    %233 = sbr.rel (0) target = $region37
  $region36: #{tpu_custom_call.1} parent=0 // pred_region
    _
  $region37: #{tpu_custom_call.1} parent=0 // pred_fallthru
    _

</llo_original>
